<compile_context>
chip_gen: v6e
topology: v6e:2x2x1
jax: 0.10.0
libtpu: 0.0.40
codegen_flags: <defaults>
</compile_context>

<pallas_src>
import jax
import jax.numpy as jnp
from jax.experimental import pallas as pl
from jax.experimental.pallas import tpu as pltpu


# ---------------- Pallas kernels ----------------

def routed_expert_kernel(expert_ref, active_ref, x_ref, w_ref,
                         wg_ref, wu_ref, wd_ref, o_ref, acc_ref):
    # grid = (token_tile, I_tile). expert_ref[t] selects this tile's expert weight
    # slices via the BlockSpec index_maps; active_ref[t] == 0 marks a fully padded
    # (dead) tile whose MXU work can be skipped.
    t = pl.program_id(0)
    i = pl.program_id(1)

    @pl.when(i == 0)
    def _():
        acc_ref[...] = jnp.zeros_like(acc_ref)

    @pl.when(active_ref[t] != 0)
    def _():
        x = x_ref[...]                                                    # (tm, D) bf16
        g = jnp.dot(x, wg_ref[...], preferred_element_type=jnp.float32)  # (tm, ti) f32
        u = jnp.dot(x, wu_ref[...], preferred_element_type=jnp.float32)
        h = (g * jax.nn.sigmoid(g) * u).astype(wd_ref.dtype)             # SiLU(g)*u -> bf16
        acc_ref[...] += jnp.dot(h, wd_ref[...], preferred_element_type=jnp.float32)

    @pl.when(i == pl.num_programs(1) - 1)
    def _():
        # combine weight folded here (per-row broadcast, free VPU filler under MXU slack)
        o_ref[...] = (acc_ref[...] * w_ref[...]).astype(o_ref.dtype)


def shared_expert_kernel(x_ref, wg_ref, wu_ref, wd_ref, o_ref, acc_ref):
    # Shared expert at its true intermediate size; independent of routing so XLA
    # can overlap it with the gating / packing glue.
    i = pl.program_id(1)

    @pl.when(i == 0)
    def _():
        acc_ref[...] = jnp.zeros_like(acc_ref)

    x = x_ref[...]
    g = jnp.dot(x, wg_ref[...], preferred_element_type=jnp.float32)
    u = jnp.dot(x, wu_ref[...], preferred_element_type=jnp.float32)
    h = (g * jax.nn.sigmoid(g) * u).astype(wd_ref.dtype)
    acc_ref[...] += jnp.dot(h, wd_ref[...], preferred_element_type=jnp.float32)

    @pl.when(i == pl.num_programs(1) - 1)
    def _():
        o_ref[...] = acc_ref[...].astype(o_ref.dtype)


# ---------------- tile-size / VMEM helpers ----------------

def _round_up(x, m):
    return ((x + m - 1) // m) * m


def _vmem_budget_bytes():
    # Per-TensorCore VMEM cap from the actual chip (64 MiB/TC on v7x, 128 MiB on
    # v5e/v6e); keep 25% headroom for Mosaic internals, cap the request at 96 MiB.
    cap = 64 * 1024 * 1024
    try:
        info = pltpu.get_tpu_info()
        cap = int(getattr(info, "vmem_capacity_bytes", cap))
    except Exception:
        pass
    return min((cap * 3) // 4, 96 * 1024 * 1024)


def _routed_vmem_bytes(D, tm, ti):
    # double-buffered bf16 weight blocks (gate/up/down) + double-buffered x (bf16)
    # and out (f32) token tiles + f32 accumulator + (tm, 1) combine-weight column
    weights = 3 * 2 * D * ti * 2
    io = 2 * tm * D * 2 + 2 * tm * D * 4 + tm * D * 4 + 2 * tm * 4
    return weights + io


def _pick_routed_token_tile(Tk, E, target=256):
    # multiple of 8; small at tiny problem sizes (keeps per-expert padding low),
    # grows to `target` (fills the 256x256 MXU, raises flop/byte) at real sizes.
    t = 8
    while t < target and t * 2 <= max(8, Tk // max(1, E)):
        t *= 2
    return t


def _pick_dense_token_tile(T, target=256):
    if T <= target:
        return T
    if T % target == 0:
        return target
    for cand in range(target - 8, 7, -8):
        if T % cand == 0:
            return cand
    return T


def _pick_inner_tile(I, D, tm, budget):
    # Largest I tile (multiple of 128 dividing I, or I itself) whose working set
    # fits the per-TensorCore VMEM budget: 1024 fits v5e/v6e's 128 MiB easily,
    # v7x's 64 MiB/TC drops this to 512/384/256 at large D.
    cands = [I] + [c for c in (1024, 768, 512, 384, 256, 128) if c < I and I % c == 0]
    for ti in cands:
        if _routed_vmem_bytes(D, tm, ti) <= int(budget * 0.85):
            return ti
    return cands[-1]


# ---------------- wrapper ----------------

def genjo_sparse_moe_forward(hidden_states, params):
    B, S, D = hidden_states.shape
    T = B * S
    x32 = hidden_states.reshape(T, D).astype(jnp.float32)     # routing in f32
    xbf = hidden_states.reshape(T, D).astype(jnp.bfloat16)    # expert inputs in bf16

    gate_w = params["gate_w"]                                  # (E, D) f32
    WG, WU, WD = params["WG"], params["WU"], params["WD"]      # bf16 (E,D,I),(E,D,I),(E,I,D)
    SG, SU, SD = params["SG"], params["SU"], params["SD"]      # bf16 (D,Is),(D,Is),(Is,D)
    E, _, I = WG.shape
    I_s = SG.shape[1]
    k = params["top_k"]

    budget = _vmem_budget_bytes()

    # ---- gating: plain XLA (16-wide MXU output would waste the array), f32 ----
    logits = jnp.dot(x32, gate_w.T, precision=jax.lax.Precision.HIGHEST)
    scores = jax.nn.softmax(logits, axis=-1)                   # (T, E)
    topk_w, topk_i = jax.lax.top_k(scores, k)                  # no renorm (norm_topk_prob=False)

    # ---- sort assignments by expert; derive the per-expert tm-padded layout ----
    Tk = T * k
    tm = _pick_routed_token_tile(Tk, E)
    ti = _pick_inner_tile(I, D, tm, budget)
    while tm > 8 and _routed_vmem_bytes(D, tm, ti) > int(budget * 0.85):
        tm = max(8, tm // 2)                                   # v7x / huge-D safety valve
        ti = _pick_inner_tile(I, D, tm, budget)

    expert_idx = topk_i.reshape(-1)                            # (Tk,)
    order = jnp.argsort(expert_idx)
    sorted_expert = expert_idx[order]
    sorted_token = (order // k).astype(jnp.int32)
    sorted_weight = topk_w.reshape(-1)[order].astype(jnp.float32)

    counts = jnp.bincount(expert_idx, length=E)                # (E,)
    padded = ((counts + tm - 1) // tm) * tm                    # per-expert tile-padded counts
    grp_start = jnp.concatenate([jnp.zeros((1,), padded.dtype), jnp.cumsum(padded)[:-1]])
    grp_end = jnp.cumsum(padded)
    exp_start = jnp.concatenate([jnp.zeros((1,), counts.dtype), jnp.cumsum(counts)[:-1]])

    # padded destination row of every assignment (tiny int scatter) — used by the
    # k-way gather combine at the end
    rank = jnp.arange(Tk) - exp_start[sorted_expert]
    dst_sorted = (grp_start[sorted_expert] + rank).astype(jnp.int32)
    dst_flat = jnp.zeros((Tk,), jnp.int32).at[order].set(dst_sorted).reshape(T, k)

    # tight static bound; multiple of 2*tm keeps both v7x TensorCores balanced
    L_max = _round_up(Tk + E * (tm - 1), 2 * tm)
    num_tiles = L_max // tm

    # ---- gather-based packing (no (L_max, D) scatter on the critical path) ----
    slot = jnp.arange(L_max, dtype=jnp.int32)
    slot_expert = jnp.clip(
        jnp.sum(slot[:, None] >= grp_end[None, :], axis=1), 0, E - 1).astype(jnp.int32)
    r = slot - grp_start[slot_expert]
    valid = r < counts[slot_expert]
    src_sorted = jnp.where(valid, exp_start[slot_expert] + r, 0)
    src_token = jnp.where(valid, sorted_token[src_sorted], 0)
    x_pad = jnp.where(valid[:, None], xbf[src_token], jnp.zeros((), jnp.bfloat16))
    w_pad = jnp.where(valid, sorted_weight[src_sorted], 0.0).astype(jnp.float32)[:, None]

    tile_start = jnp.arange(num_tiles, dtype=jnp.int32) * tm
    tile_expert = slot_expert[tile_start]                      # constant within a tile
    tile_active = (tile_start < grp_end[-1]).astype(jnp.int32)  # dead tiles only trail

    # ---- routed experts: grouped & tiled, bf16 MXU / f32 accumulation ----
    ni = I // ti
    out_pad = pl.pallas_call(
        routed_expert_kernel,
        out_shape=jax.ShapeDtypeStruct((L_max, D), jnp.float32),
        grid_spec=pltpu.PrefetchScalarGridSpec(
            num_scalar_prefetch=2,
            grid=(num_tiles, ni),
            in_specs=[
                pl.BlockSpec((tm, D), lambda t, i, g, a: (t, 0)),
                pl.BlockSpec((tm, 1), lambda t, i, g, a: (t, 0)),
                pl.BlockSpec((None, D, ti), lambda t, i, g, a: (g[t], 0, i)),
                pl.BlockSpec((None, D, ti), lambda t, i, g, a: (g[t], 0, i)),
                pl.BlockSpec((None, ti, D), lambda t, i, g, a: (g[t], i, 0)),
            ],
            out_specs=pl.BlockSpec((tm, D), lambda t, i, g, a: (t, 0)),
            scratch_shapes=[pltpu.VMEM((tm, D), jnp.float32)],
        ),
        compiler_params=pltpu.CompilerParams(
            dimension_semantics=("parallel", "arbitrary"),
            vmem_limit_bytes=budget),
    )(tile_expert, tile_active, x_pad, w_pad, WG, WU, WD)

    # ---- shared expert: independent of routing (true intermediate size) ----
    tms = _pick_dense_token_tile(T)
    tis = _pick_inner_tile(I_s, D, tms, budget)
    y_shared = pl.pallas_call(
        shared_expert_kernel,
        out_shape=jax.ShapeDtypeStruct((T, D), jnp.float32),
        grid_spec=pltpu.PrefetchScalarGridSpec(
            num_scalar_prefetch=0,
            grid=(T // tms, I_s // tis),
            in_specs=[
                pl.BlockSpec((tms, D), lambda t, i: (t, 0)),
                pl.BlockSpec((D, tis), lambda t, i: (0, i)),
                pl.BlockSpec((D, tis), lambda t, i: (0, i)),
                pl.BlockSpec((tis, D), lambda t, i: (i, 0)),
            ],
            out_specs=pl.BlockSpec((tms, D), lambda t, i: (t, 0)),
            scratch_shapes=[pltpu.VMEM((tms, D), jnp.float32)],
        ),
        compiler_params=pltpu.CompilerParams(
            dimension_semantics=("parallel", "arbitrary"),
            vmem_limit_bytes=budget),
    )(xbf, SG, SU, SD)

    # ---- combine: shared output + k-way gather of weighted routed rows ----
    y = y_shared
    for j in range(k):
        y = y + out_pad[dst_flat[:, j]]
    return y.reshape(B, S, D).astype(hidden_states.dtype)


# ---------------- deterministic parameter construction ----------------

def make_params(key, embed_dim, mlp_ratio=4, num_experts=16, num_experts_per_tok=2,
                n_shared_experts=2):
    D = embed_dim
    I = mlp_ratio * D
    I_s = n_shared_experts * D
    keys = jax.random.split(key, 7)

    def uinit(k, shape, fan_in):
        bound = 1.0 / jnp.sqrt(fan_in)
        return jax.random.uniform(k, shape, jnp.float32, -bound, bound)

    gate_w = uinit(keys[0], (num_experts, D), D)                       # routing stays f32

    # routed experts, stored transposed for x @ W, bf16 (MXU-native, halves DMA)
    WG = uinit(keys[1], (num_experts, D, I), D).astype(jnp.bfloat16)
    WU = uinit(keys[2], (num_experts, D, I), D).astype(jnp.bfloat16)
    WD = uinit(keys[3], (num_experts, I, D), I).astype(jnp.bfloat16)

    # shared expert at its true intermediate size (no zero padding)
    SG = uinit(keys[4], (D, I_s), D).astype(jnp.bfloat16)
    SU = uinit(keys[5], (D, I_s), D).astype(jnp.bfloat16)
    SD = uinit(keys[6], (I_s, D), I_s).astype(jnp.bfloat16)

    return {"gate_w": gate_w, "WG": WG, "WU": WU, "WD": WD,
            "SG": SG, "SU": SU, "SD": SD, "top_k": num_experts_per_tok}


# ---------------- pure-JAX reference (for sanity check) ----------------

def reference_forward(hidden_states, params):
    B, S, D = hidden_states.shape
    T = B * S
    x32 = hidden_states.reshape(T, D).astype(jnp.float32)
    xbf = hidden_states.reshape(T, D).astype(jnp.bfloat16)

    logits = jnp.dot(x32, params["gate_w"].T, precision=jax.lax.Precision.HIGHEST)
    scores = jax.nn.softmax(logits, axis=-1)
    topk_w, topk_i = jax.lax.top_k(scores, params["top_k"])
    E = params["gate_w"].shape[0]

    def mlp(x, wg, wu, wd):
        g = jnp.dot(x, wg, preferred_element_type=jnp.float32)
        u = jnp.dot(x, wu, preferred_element_type=jnp.float32)
        h = (g * jax.nn.sigmoid(g) * u).astype(jnp.bfloat16)
        return jnp.dot(h, wd, preferred_element_type=jnp.float32)

    y = jnp.zeros((T, D), jnp.float32)
    for e in range(E):
        w_e = jnp.sum(jnp.where(topk_i == e, topk_w, 0.0), axis=1)     # (T,)
        y = y + w_e[:, None] * mlp(xbf, params["WG"][e], params["WU"][e], params["WD"][e])
    y = y + mlp(xbf, params["SG"], params["SU"], params["SD"])          # shared, weight 1
    return y.reshape(B, S, D)


if __name__ == "__main__":
    B, S, D = 2, 8, 32           # batch=2, seq=8, embed_dim=32
    key = jax.random.PRNGKey(0)
    k_x, k_p = jax.random.split(key)

    x = jax.random.normal(k_x, (B, S, D), jnp.float32)
    params = make_params(k_p, embed_dim=D, mlp_ratio=4, num_experts=16,
                         num_experts_per_tok=2, n_shared_experts=2)

    y = genjo_sparse_moe_forward(x, params)
    y = jax.block_until_ready(y)

    y_ref = reference_forward(x, params)
    assert y.shape == (B, S, D)
    assert jnp.allclose(y, y_ref, atol=2e-3, rtol=2e-3), "mismatch vs reference"

    print("KERNEL_OK")
</pallas_src>

<mosaic_0001>
module attributes {stable_mosaic.version = 11 : i64} {
  func.func @routed_expert_kernel(%arg0: i32, %arg1: i32, %arg2: memref<18xi32, #tpu.memory_space<smem>>, %arg3: memref<18xi32, #tpu.memory_space<smem>>, %arg4: memref<8x32xbf16, #tpu.memory_space<vmem>>, %arg5: memref<8x1xf32, #tpu.memory_space<vmem>>, %arg6: memref<1x32x128xbf16, #tpu.memory_space<vmem>>, %arg7: memref<1x32x128xbf16, #tpu.memory_space<vmem>>, %arg8: memref<1x128x32xbf16, #tpu.memory_space<vmem>>, %arg9: memref<8x32xf32, #tpu.memory_space<vmem>>, %arg10: memref<8x32xf32, #tpu.memory_space<vmem>>) attributes {dimension_semantics = [#tpu.dimension_semantics<parallel>, #tpu.dimension_semantics<arbitrary>], iteration_bounds = array<i64: 18, 1>, scalar_prefetch = 2 : i64, scratch_operands = 1 : i64, tpu.core_type = #tpu.core_type<tc>, window_params = [{transform_indices = @transform_0, window_bounds = array<i64: 8, 32>}, {transform_indices = @transform_1, window_bounds = array<i64: 8, 1>}, {transform_indices = @transform_2, window_bounds = array<i64: 1, 32, 128>}, {transform_indices = @transform_3, window_bounds = array<i64: 1, 32, 128>}, {transform_indices = @transform_4, window_bounds = array<i64: 1, 128, 32>}, {transform_indices = @transform_5, window_bounds = array<i64: 8, 32>}]} {
    %c0_i32 = arith.constant 0 : i32
    %0 = arith.cmpi eq, %arg1, %c0_i32 : i32
    %1 = arith.extui %0 : i1 to i32
    %c0_i32_0 = arith.constant 0 : i32
    %2 = arith.cmpi ne, %1, %c0_i32_0 : i32
    scf.if %2 {
      %cst = arith.constant 0.000000e+00 : f32
      %11 = vector.broadcast %cst : f32 to vector<8x32xf32>
      %c0 = arith.constant 0 : index
      %c0_5 = arith.constant 0 : index
      %12 = vector.load %arg10[%c0, %c0_5] : memref<8x32xf32, #tpu.memory_space<vmem>>, vector<8x32xf32>
      tpu.vector_store %arg10[%c0, %c0_5], %11 {strides = array<i32>} : memref<8x32xf32, #tpu.memory_space<vmem>>, vector<8x32xf32>,
    } else {
    }
    %3 = arith.index_cast %arg0 : i32 to index
    %4 = memref.load %arg3[%3] : memref<18xi32, #tpu.memory_space<smem>>
    %c0_i32_1 = arith.constant 0 : i32
    %5 = arith.cmpi ne, %4, %c0_i32_1 : i32
    %6 = arith.extui %5 : i1 to i32
    %c0_i32_2 = arith.constant 0 : i32
    %7 = arith.cmpi ne, %6, %c0_i32_2 : i32
    scf.if %7 {
      %c0 = arith.constant 0 : index
      %c0_5 = arith.constant 0 : index
      %11 = vector.load %arg4[%c0, %c0_5] : memref<8x32xbf16, #tpu.memory_space<vmem>>, vector<8x32xbf16>
      %c0_6 = arith.constant 0 : index
      %c0_7 = arith.constant 0 : index
      %c0_8 = arith.constant 0 : index
      %12 = vector.load %arg6[%c0_6, %c0_7, %c0_8] : memref<1x32x128xbf16, #tpu.memory_space<vmem>>, vector<1x32x128xbf16>
      %13 = vector.shape_cast %12 : vector<1x32x128xbf16> to vector<32x128xbf16>
      %cst = arith.constant dense<0.000000e+00> : vector<8x128xf32>
      %14 = tpu.matmul %11, %13, %cst {dimension_numbers = #tpu.dot_dimension_numbers<[1], [0], [0], [1], [0, 0, 1, 1], [], []>} : vector<8x32xbf16>, vector<32x128xbf16>, vector<8x128xf32> -> vector<8x128xf32>
      %c0_9 = arith.constant 0 : index
      %c0_10 = arith.constant 0 : index
      %c0_11 = arith.constant 0 : index
      %15 = vector.load %arg7[%c0_9, %c0_10, %c0_11] : memref<1x32x128xbf16, #tpu.memory_space<vmem>>, vector<1x32x128xbf16>
      %16 = vector.shape_cast %15 : vector<1x32x128xbf16> to vector<32x128xbf16>
      %cst_12 = arith.constant dense<0.000000e+00> : vector<8x128xf32>
      %17 = tpu.matmul %11, %16, %cst_12 {dimension_numbers = #tpu.dot_dimension_numbers<[1], [0], [0], [1], [0, 0, 1, 1], [], []>} : vector<8x32xbf16>, vector<32x128xbf16>, vector<8x128xf32> -> vector<8x128xf32>
      %18 = arith.negf %14 : vector<8x128xf32>
      %19 = math.exp %18 : vector<8x128xf32>
      %cst_13 = arith.constant 1.000000e+00 : f32
      %20 = vector.broadcast %cst_13 : f32 to vector<8x128xf32>
      %21 = arith.addf %20, %19 : vector<8x128xf32>
      %22 = arith.divf %20, %21 : vector<8x128xf32>
      %23 = arith.mulf %14, %22 : vector<8x128xf32>
      %24 = arith.mulf %23, %17 : vector<8x128xf32>
      %25 = arith.truncf %24 : vector<8x128xf32> to vector<8x128xbf16>
      %c0_14 = arith.constant 0 : index
      %c0_15 = arith.constant 0 : index
      %26 = vector.load %arg10[%c0_14, %c0_15] : memref<8x32xf32, #tpu.memory_space<vmem>>, vector<8x32xf32>
      %c0_16 = arith.constant 0 : index
      %c0_17 = arith.constant 0 : index
      %c0_18 = arith.constant 0 : index
      %27 = vector.load %arg8[%c0_16, %c0_17, %c0_18] : memref<1x128x32xbf16, #tpu.memory_space<vmem>>, vector<1x128x32xbf16>
      %28 = vector.shape_cast %27 : vector<1x128x32xbf16> to vector<128x32xbf16>
      %cst_19 = arith.constant dense<0.000000e+00> : vector<8x32xf32>
      %29 = tpu.matmul %25, %28, %cst_19 {dimension_numbers = #tpu.dot_dimension_numbers<[1], [0], [0], [1], [0, 0, 1, 1], [], []>} : vector<8x128xbf16>, vector<128x32xbf16>, vector<8x32xf32> -> vector<8x32xf32>
      %30 = arith.addf %26, %29 : vector<8x32xf32>
      %c0_20 = arith.constant 0 : index
      %c0_21 = arith.constant 0 : index
      %31 = vector.load %arg10[%c0_20, %c0_21] : memref<8x32xf32, #tpu.memory_space<vmem>>, vector<8x32xf32>
      tpu.vector_store %arg10[%c0_20, %c0_21], %30 {strides = array<i32>} : memref<8x32xf32, #tpu.memory_space<vmem>>, vector<8x32xf32>,
    } else {
    }
    %c0_i32_3 = arith.constant 0 : i32
    %8 = arith.cmpi eq, %arg1, %c0_i32_3 : i32
    %9 = arith.extui %8 : i1 to i32
    %c0_i32_4 = arith.constant 0 : i32
    %10 = arith.cmpi ne, %9, %c0_i32_4 : i32
    scf.if %10 {
      %c0 = arith.constant 0 : index
      %c0_5 = arith.constant 0 : index
      %11 = vector.load %arg10[%c0, %c0_5] : memref<8x32xf32, #tpu.memory_space<vmem>>, vector<8x32xf32>
      %c0_6 = arith.constant 0 : index
      %c0_7 = arith.constant 0 : index
      %12 = vector.load %arg5[%c0_6, %c0_7] : memref<8x1xf32, #tpu.memory_space<vmem>>, vector<8x1xf32>
      %13 = vector.broadcast %12 : vector<8x1xf32> to vector<8x32xf32>
      %14 = arith.mulf %11, %13 : vector<8x32xf32>
      %c0_8 = arith.constant 0 : index
      %c0_9 = arith.constant 0 : index
      %15 = vector.load %arg9[%c0_8, %c0_9] : memref<8x32xf32, #tpu.memory_space<vmem>>, vector<8x32xf32>
      tpu.vector_store %arg9[%c0_8, %c0_9], %14 {strides = array<i32>} : memref<8x32xf32, #tpu.memory_space<vmem>>, vector<8x32xf32>,
    } else {
    }
    return
  }
  func.func @transform_0(%arg0: i32, %arg1: i32, %arg2: memref<18xi32, #tpu.memory_space<smem>>, %arg3: memref<18xi32, #tpu.memory_space<smem>>) -> (i32, i32) {
    %c0_i32 = arith.constant 0 : i32
    %c0_i32_0 = arith.constant 0 : i32
    return %arg0, %c0_i32 : i32, i32
  }
  func.func @transform_1(%arg0: i32, %arg1: i32, %arg2: memref<18xi32, #tpu.memory_space<smem>>, %arg3: memref<18xi32, #tpu.memory_space<smem>>) -> (i32, i32) {
    %c0_i32 = arith.constant 0 : i32
    %c0_i32_0 = arith.constant 0 : i32
    return %arg0, %c0_i32 : i32, i32
  }
  func.func @transform_2(%arg0: i32, %arg1: i32, %arg2: memref<18xi32, #tpu.memory_space<smem>>, %arg3: memref<18xi32, #tpu.memory_space<smem>>) -> (i32, i32, i32) {
    %0 = arith.index_cast %arg0 : i32 to index
    %1 = memref.load %arg2[%0] : memref<18xi32, #tpu.memory_space<smem>>
    %c0_i32 = arith.constant 0 : i32
    %c0_i32_0 = arith.constant 0 : i32
    return %1, %c0_i32, %arg1 : i32, i32, i32
  }
  func.func @transform_3(%arg0: i32, %arg1: i32, %arg2: memref<18xi32, #tpu.memory_space<smem>>, %arg3: memref<18xi32, #tpu.memory_space<smem>>) -> (i32, i32, i32) {
    %0 = arith.index_cast %arg0 : i32 to index
    %1 = memref.load %arg2[%0] : memref<18xi32, #tpu.memory_space<smem>>
    %c0_i32 = arith.constant 0 : i32
    %c0_i32_0 = arith.constant 0 : i32
    return %1, %c0_i32, %arg1 : i32, i32, i32
  }
  func.func @transform_4(%arg0: i32, %arg1: i32, %arg2: memref<18xi32, #tpu.memory_space<smem>>, %arg3: memref<18xi32, #tpu.memory_space<smem>>) -> (i32, i32, i32) {
    %0 = arith.index_cast %arg0 : i32 to index
    %1 = memref.load %arg2[%0] : memref<18xi32, #tpu.memory_space<smem>>
    %c0_i32 = arith.constant 0 : i32
    %c0_i32_0 = arith.constant 0 : i32
    return %1, %arg1, %c0_i32 : i32, i32, i32
  }
  func.func @transform_5(%arg0: i32, %arg1: i32, %arg2: memref<18xi32, #tpu.memory_space<smem>>, %arg3: memref<18xi32, #tpu.memory_space<smem>>) -> (i32, i32) {
    %c0_i32 = arith.constant 0 : i32
    %c0_i32_0 = arith.constant 0 : i32
    return %arg0, %c0_i32 : i32, i32
  }
}

</mosaic_0001>

<llo_original>
// kernel: tpu_custom_call.1
$region0: #{tpu_custom_call.1}
  #allocation0 [shape = 'u32[]', space=smem, size = 0x4, offset = 0x4, fixed_abs, tag = 'smem constant byte address 0x4 - core index']
  #allocation1 [shape = 'u32[144,128]{1,0:T(1,128)}', space=vmem, size = 0x12000, scoped, tag = 'internal scratch']
  #allocation2 [shape = 'f32[8,32]{1,0:T(8,128)}', space=vmem, size = 0x1000, scoped, tag = 'scratch operand']
  #allocation3 [shape = 's32[1]{0}', space=sflag, size = 0x4, scoped, tag = 'scoped memory for tpu_custom_call.1']
  #allocation4 [shape = 'u8[512]{0}', space=smem, size = 0x200, scoped, tag = 'prefetched SMEM operand 0']
  #allocation5 [shape = 'u8[512]{0}', space=smem, size = 0x200, scoped, tag = 'prefetched SMEM operand 1']
  %s0 = inlined_call_operand.vmem [shape: s32[18], index: 0, kind: input, shape index: {}]
  %s1 = inlined_call_operand.vmem [shape: s32[18], index: 1, kind: input, shape index: {}]
  %s2 = inlined_call_operand.vmem [shape: bf16[144,32], index: 2, kind: input, shape index: {}]
  %s3 = inlined_call_operand.vmem [shape: f32[144,1], index: 3, kind: input, shape index: {}]
  %s4 = inlined_call_operand.vmem [shape: bf16[16,32,128], index: 4, kind: input, shape index: {}]
  %s5 = inlined_call_operand.vmem [shape: bf16[16,32,128], index: 5, kind: input, shape index: {}]
  %s6 = inlined_call_operand.vmem [shape: bf16[16,128,32], index: 6, kind: input, shape index: {}]
  %s7 = inlined_call_operand.vmem [shape: f32[144,32], index: 7, kind: output, shape index: {}]
  %s8 = sld [smem:[#allocation0]]
  $region65: #{tpu_custom_call.1} parent=0
    _
  %s10 = ssub.s32 1, %s8
  %s11 = scalar_select 0, %s10, %s8
  %s12 = sshll.u32 %s0, 4
  %s13 = int_to_ptr.vmem [resolvable:$true] %s12
  %15 = dma.vmem_to_smem %s13, 16, [#allocation4], [#allocation3]
  %s16 = sshll.u32 %s1, 4
  %s17 = int_to_ptr.vmem [resolvable:$true] %s16
  %19 = dma.vmem_to_smem %s17, 16, [#allocation5], [#allocation3]
  %20 = dma.done [#allocation3], 32
  %21 = sfence
  loop: start=0, step=1, limit=20
  $region2: #{tpu_custom_call.1} parent=0 // loop_pre_header
    _
  $region3: #{tpu_custom_call.1} parent=0 // loop_header
    %s23 = sphi 0, %s27
    %p24 = scmp.ge.s32.totalorder %s23, 20
    %s30 = sphi 0, %s42
    %s31 = sphi 0, %s38
    %s32 = sphi 0, %s30
    %s33 = sphi 0, %s31
    %s34 = sphi 0, %s32
    %s35 = sphi 0, %s33
    %s45 = sphi 0, %s47
    %s48 = sphi 0, %s45
    %s49 = sphi 0, %s48
    %s65 = sphi 0, %s49
    %s71 = sphi 0, %s73
    %s74 = sphi 0, %s71
    %s75 = sphi 0, %s74
    %s91 = sphi 0, %s75
    %s101 = sphi 0, %s103
    %s104 = sphi 0, %s101
    %s105 = sphi 0, %s104
    %s121 = sphi 0, %s105
    %s131 = sphi 0, %s133
    %s134 = sphi 0, %s131
    %s135 = sphi 0, %s134
    %s151 = sphi 0, %s135
    %s161 = sphi 0, %s163
    %s164 = sphi 0, %s161
    %s165 = sphi 0, %s164
    %s181 = sphi 0, %s165
    %s187 = sphi 0, %s189
    %s190 = sphi 0, %s187
    %s191 = sphi 0, %s190
    %s207 = sphi 0, %s191
  $region4: #{tpu_custom_call.1} parent=0 // loop_header_branch
    %26 = sbr.rel (%p24) target = $region8
  $region5: #{tpu_custom_call.1} parent=0 // loop_body
    %s28 = ssub.s32 %s23, 1
    %s29 = ssub.s32 %s23, 2
    %s36 = sadd.s32 1, %s31
    %p37 = scmp.ge.s32.totalorder %s36, 1
    %s38 = scalar_select %p37, 0, %s36
    %s39 = sadd.s32 1, %s30
    %s40 = scalar_select %p37, %s39, %s30
    %p41 = scmp.ge.s32.totalorder %s40, 18
    %s42 = scalar_select %p41, 0, %s40
    %s43 = ssub.s32 %s30, %s42
    %p44 = scmp.eq.s32.totalorder %s43, 0
    %s46 = sadd.s32 %s45, 1
    %s47 = scalar_select %p44, %s45, %s46
    %p50 = pneg %p44
    %p51 = scmp.eq.s32.totalorder %s23, 17
    %p52 = por %p50, %p51
    %p53 = scmp.ne.s32.totalorder %s45, %s48
    %p54 = scmp.eq.s32.totalorder %s23, 0
    %p55 = por %p53, %p54
    %p56 = scmp.ne.s32.totalorder %s45, %s48
    %p57 = scmp.eq.s32.totalorder %s28, 17
    %p58 = por %p56, %p57
    %p59 = scmp.ne.s32.totalorder %s48, %s49
    %p60 = scmp.eq.s32.totalorder %s28, 0
    %p61 = por %p59, %p60
    %p62 = scmp.ne.s32.totalorder %s48, %s49
    %p63 = scmp.eq.s32.totalorder %s29, 17
    %p64 = por %p62, %p63
    %p66 = scmp.ne.s32.totalorder %s49, %s65
    %p67 = scmp.eq.s32.totalorder %s29, 0
    %p68 = por %p66, %p67
    %s69 = ssub.s32 %s30, %s42
    %p70 = scmp.eq.s32.totalorder %s69, 0
    %s72 = sadd.s32 %s71, 1
    %s73 = scalar_select %p70, %s71, %s72
    %p76 = pneg %p70
    %p77 = scmp.eq.s32.totalorder %s23, 17
    %p78 = por %p76, %p77
    %p79 = scmp.ne.s32.totalorder %s71, %s74
    %p80 = scmp.eq.s32.totalorder %s23, 0
    %p81 = por %p79, %p80
    %p82 = scmp.ne.s32.totalorder %s71, %s74
    %p83 = scmp.eq.s32.totalorder %s28, 17
    %p84 = por %p82, %p83
    %p85 = scmp.ne.s32.totalorder %s74, %s75
    %p86 = scmp.eq.s32.totalorder %s28, 0
    %p87 = por %p85, %p86
    %p88 = scmp.ne.s32.totalorder %s74, %s75
    %p89 = scmp.eq.s32.totalorder %s29, 17
    %p90 = por %p88, %p89
    %p92 = scmp.ne.s32.totalorder %s75, %s91
    %p93 = scmp.eq.s32.totalorder %s29, 0
    %p94 = por %p92, %p93
    %s95 = sld [smem:[#allocation4 + %s30]]
    %s96 = sld [smem:[#allocation4 + %s42]]
    %s97 = ssub.s32 %s95, %s96
    %s98 = ssub.s32 %s31, %s38
    %s99 = sor.u32 %s97, %s98
    %p100 = scmp.eq.s32.totalorder %s99, 0
    %s102 = sadd.s32 %s101, 1
    %s103 = scalar_select %p100, %s101, %s102
    %p106 = pneg %p100
    %p107 = scmp.eq.s32.totalorder %s23, 17
    %p108 = por %p106, %p107
    %p109 = scmp.ne.s32.totalorder %s101, %s104
    %p110 = scmp.eq.s32.totalorder %s23, 0
    %p111 = por %p109, %p110
    %p112 = scmp.ne.s32.totalorder %s101, %s104
    %p113 = scmp.eq.s32.totalorder %s28, 17
    %p114 = por %p112, %p113
    %p115 = scmp.ne.s32.totalorder %s104, %s105
    %p116 = scmp.eq.s32.totalorder %s28, 0
    %p117 = por %p115, %p116
    %p118 = scmp.ne.s32.totalorder %s104, %s105
    %p119 = scmp.eq.s32.totalorder %s29, 17
    %p120 = por %p118, %p119
    %p122 = scmp.ne.s32.totalorder %s105, %s121
    %p123 = scmp.eq.s32.totalorder %s29, 0
    %p124 = por %p122, %p123
    %s125 = sld [smem:[#allocation4 + %s30]]
    %s126 = sld [smem:[#allocation4 + %s42]]
    %s127 = ssub.s32 %s125, %s126
    %s128 = ssub.s32 %s31, %s38
    %s129 = sor.u32 %s127, %s128
    %p130 = scmp.eq.s32.totalorder %s129, 0
    %s132 = sadd.s32 %s131, 1
    %s133 = scalar_select %p130, %s131, %s132
    %p136 = pneg %p130
    %p137 = scmp.eq.s32.totalorder %s23, 17
    %p138 = por %p136, %p137
    %p139 = scmp.ne.s32.totalorder %s131, %s134
    %p140 = scmp.eq.s32.totalorder %s23, 0
    %p141 = por %p139, %p140
    %p142 = scmp.ne.s32.totalorder %s131, %s134
    %p143 = scmp.eq.s32.totalorder %s28, 17
    %p144 = por %p142, %p143
    %p145 = scmp.ne.s32.totalorder %s134, %s135
    %p146 = scmp.eq.s32.totalorder %s28, 0
    %p147 = por %p145, %p146
    %p148 = scmp.ne.s32.totalorder %s134, %s135
    %p149 = scmp.eq.s32.totalorder %s29, 17
    %p150 = por %p148, %p149
    %p152 = scmp.ne.s32.totalorder %s135, %s151
    %p153 = scmp.eq.s32.totalorder %s29, 0
    %p154 = por %p152, %p153
    %s155 = sld [smem:[#allocation4 + %s30]]
    %s156 = sld [smem:[#allocation4 + %s42]]
    %s157 = ssub.s32 %s155, %s156
    %s158 = ssub.s32 %s31, %s38
    %s159 = sor.u32 %s157, %s158
    %p160 = scmp.eq.s32.totalorder %s159, 0
    %s162 = sadd.s32 %s161, 1
    %s163 = scalar_select %p160, %s161, %s162
    %p166 = pneg %p160
    %p167 = scmp.eq.s32.totalorder %s23, 17
    %p168 = por %p166, %p167
    %p169 = scmp.ne.s32.totalorder %s161, %s164
    %p170 = scmp.eq.s32.totalorder %s23, 0
    %p171 = por %p169, %p170
    %p172 = scmp.ne.s32.totalorder %s161, %s164
    %p173 = scmp.eq.s32.totalorder %s28, 17
    %p174 = por %p172, %p173
    %p175 = scmp.ne.s32.totalorder %s164, %s165
    %p176 = scmp.eq.s32.totalorder %s28, 0
    %p177 = por %p175, %p176
    %p178 = scmp.ne.s32.totalorder %s164, %s165
    %p179 = scmp.eq.s32.totalorder %s29, 17
    %p180 = por %p178, %p179
    %p182 = scmp.ne.s32.totalorder %s165, %s181
    %p183 = scmp.eq.s32.totalorder %s29, 0
    %p184 = por %p182, %p183
    %s185 = ssub.s32 %s30, %s42
    %p186 = scmp.eq.s32.totalorder %s185, 0
    %s188 = sadd.s32 %s187, 1
    %s189 = scalar_select %p186, %s187, %s188
    %p192 = pneg %p186
    %p193 = scmp.eq.s32.totalorder %s23, 17
    %p194 = por %p192, %p193
    %p195 = scmp.ne.s32.totalorder %s187, %s190
    %p196 = scmp.eq.s32.totalorder %s23, 0
    %p197 = por %p195, %p196
    %p198 = scmp.ne.s32.totalorder %s187, %s190
    %p199 = scmp.eq.s32.totalorder %s28, 17
    %p200 = por %p198, %p199
    %p201 = scmp.ne.s32.totalorder %s190, %s191
    %p202 = scmp.eq.s32.totalorder %s28, 0
    %p203 = por %p201, %p202
    %p204 = scmp.ne.s32.totalorder %s190, %s191
    %p205 = scmp.eq.s32.totalorder %s29, 17
    %p206 = por %p204, %p205
    %p208 = scmp.ne.s32.totalorder %s191, %s207
    %p209 = scmp.eq.s32.totalorder %s29, 0
    %p210 = por %p208, %p209
    %p211 = scmp.le.s32.totalorder 1, %s23
    %p212 = scmp.lt.s32.totalorder %s23, 19
    %p213 = pnand %p211, %p212
    %p214 = pneg %p213
    // Predicated region
    $region9: #{tpu_custom_call.1} parent=5 // pred_check
      _
    $region10: #{tpu_custom_call.1} parent=5 // pred_check_branch
      %216 = sbr.rel (%p213) target = $region12
    $region11: #{tpu_custom_call.1} parent=5 // pred_region
      %s217 = ssub.s32 %s23, 1
    $region12: #{tpu_custom_call.1} parent=5 // pred_fallthru
      _
    %p218 = scmp.lt.s32.totalorder %s23, 18
    // Predicated region
    $region13: #{tpu_custom_call.1} parent=5 // pred_check
      %p219 = pneg %p218
    $region14: #{tpu_custom_call.1} parent=5 // pred_check_branch
      %221 = sbr.rel (%p219) target = $region16
    $region15: #{tpu_custom_call.1} parent=5 // pred_region
      // Predicated region
      $region17: #{tpu_custom_call.1} parent=15 // pred_check
        %p222 = pneg %p55
      $region18: #{tpu_custom_call.1} parent=15 // pred_check_branch
        %224 = sbr.rel (%p222) target = $region20
      $region19: #{tpu_custom_call.1} parent=15 // pred_region
        %p225 = scmp.lt.s32.totalorder %s30, 17
        %s226 = scalar_select %p225, %s30, 17
        %s227 = smul.addr %s226, 4
        %s228 = scalar_lea.vmem %s2, %s227
      $region20: #{tpu_custom_call.1} parent=15 // pred_fallthru
        _
      // Predicated region
      $region21: #{tpu_custom_call.1} parent=15 // pred_check
        %p229 = pneg %p81
      $region22: #{tpu_custom_call.1} parent=15 // pred_check_branch
        %231 = sbr.rel (%p229) target = $region24
      $region23: #{tpu_custom_call.1} parent=15 // pred_region
        %p232 = scmp.lt.s32.totalorder %s30, 17
        %s233 = scalar_select %p232, %s30, 17
        %s234 = smul.addr %s233, 8
        %s235 = scalar_lea.vmem %s3, %s234
      $region24: #{tpu_custom_call.1} parent=15 // pred_fallthru
        _
      // Predicated region
      $region25: #{tpu_custom_call.1} parent=15 // pred_check
        %p236 = pneg %p111
      $region26: #{tpu_custom_call.1} parent=15 // pred_check_branch
        %238 = sbr.rel (%p236) target = $region28
      $region27: #{tpu_custom_call.1} parent=15 // pred_region
        %s239 = sld [smem:[#allocation4 + %s30]]
        %p240 = scmp.lt.s32.totalorder %s239, 15
        %s241 = scalar_select %p240, %s239, 15
        %p242 = scmp.lt.s32.totalorder %s31, 0
        %s243 = scalar_select %p242, %s31, 0
        %s244 = smul.addr %s241, 4
        %s245 = sadd.s32 %s243, %s244
        %s246 = smul.addr %s245, 4
        %s247 = scalar_lea.vmem %s4, %s246
        %s248 = sld [smem:[#allocation4 + %s30]]
      $region28: #{tpu_custom_call.1} parent=15 // pred_fallthru
        _
      // Predicated region
      $region29: #{tpu_custom_call.1} parent=15 // pred_check
        %p249 = pneg %p141
      $region30: #{tpu_custom_call.1} parent=15 // pred_check_branch
        %251 = sbr.rel (%p249) target = $region32
      $region31: #{tpu_custom_call.1} parent=15 // pred_region
        %s252 = sld [smem:[#allocation4 + %s30]]
        %p253 = scmp.lt.s32.totalorder %s252, 15
        %s254 = scalar_select %p253, %s252, 15
        %p255 = scmp.lt.s32.totalorder %s31, 0
        %s256 = scalar_select %p255, %s31, 0
        %s257 = smul.addr %s254, 4
        %s258 = sadd.s32 %s256, %s257
        %s259 = smul.addr %s258, 4
        %s260 = scalar_lea.vmem %s5, %s259
        %s261 = sld [smem:[#allocation4 + %s30]]
      $region32: #{tpu_custom_call.1} parent=15 // pred_fallthru
        _
      // Predicated region
      $region33: #{tpu_custom_call.1} parent=15 // pred_check
        %p262 = pneg %p171
      $region34: #{tpu_custom_call.1} parent=15 // pred_check_branch
        %264 = sbr.rel (%p262) target = $region36
      $region35: #{tpu_custom_call.1} parent=15 // pred_region
        %s265 = sld [smem:[#allocation4 + %s30]]
        %s266 = smul.u32 16, %s31
        %p267 = scmp.lt.s32.totalorder %s265, 15
        %s268 = scalar_select %p267, %s265, 15
        %p269 = scmp.lt.s32.totalorder %s266, 15
        %s270 = scalar_select %p269, %s266, 15
        %s271 = smul.addr %s268, 16
        %s272 = sadd.s32 %s270, %s271
        %s273 = smul.addr %s272, 4
        %s274 = scalar_lea.vmem %s6, %s273
        %s275 = sld [smem:[#allocation4 + %s30]]
        %s276 = smul.u32 16, %s31
      $region36: #{tpu_custom_call.1} parent=15 // pred_fallthru
        _
    $region16: #{tpu_custom_call.1} parent=5 // pred_fallthru
      _
    %p277 = scmp.le.s32.totalorder 1, %s23
    %p278 = scmp.lt.s32.totalorder %s23, 19
    %p279 = pnand %p277, %p278
    %p280 = pneg %p279
    // Predicated region
    $region37: #{tpu_custom_call.1} parent=5 // pred_check
      _
    $region38: #{tpu_custom_call.1} parent=5 // pred_check_branch
      %282 = sbr.rel (%p279) target = $region40
    $region39: #{tpu_custom_call.1} parent=5 // pred_region
      %s283 = ssub.s32 %s23, 1
      %p284 = scmp.lt.s32.totalorder %s32, 17
      %s285 = scalar_select %p284, %s32, 17
      %s286 = smul.addr %s285, 4
      %s287 = scalar_lea.vmem %s2, %s286
      %p288 = pneg %p61
      %p289 = pneg %p58
      %p290 = scmp.lt.s32.totalorder %s32, 17
      %s291 = scalar_select %p290, %s32, 17
      %s292 = smul.addr %s291, 8
      %s293 = scalar_lea.vmem %s3, %s292
      %p294 = pneg %p87
      %p295 = pneg %p84
      %s296 = sld [smem:[#allocation4 + %s32]]
      %p297 = scmp.lt.s32.totalorder %s296, 15
      %s298 = scalar_select %p297, %s296, 15
      %p299 = scmp.lt.s32.totalorder %s33, 0
      %s300 = scalar_select %p299, %s33, 0
      %s301 = smul.addr %s298, 4
      %s302 = sadd.s32 %s300, %s301
      %s303 = smul.addr %s302, 4
      %s304 = scalar_lea.vmem %s4, %s303
      %p305 = pneg %p117
      %p306 = pneg %p114
      %s307 = sld [smem:[#allocation4 + %s32]]
      %p308 = scmp.lt.s32.totalorder %s307, 15
      %s309 = scalar_select %p308, %s307, 15
      %p310 = scmp.lt.s32.totalorder %s33, 0
      %s311 = scalar_select %p310, %s33, 0
      %s312 = smul.addr %s309, 4
      %s313 = sadd.s32 %s311, %s312
      %s314 = smul.addr %s313, 4
      %s315 = scalar_lea.vmem %s5, %s314
      %p316 = pneg %p147
      %p317 = pneg %p144
      %s318 = sld [smem:[#allocation4 + %s32]]
      %s319 = smul.u32 16, %s33
      %p320 = scmp.lt.s32.totalorder %s318, 15
      %s321 = scalar_select %p320, %s318, 15
      %p322 = scmp.lt.s32.totalorder %s319, 15
      %s323 = scalar_select %p322, %s319, 15
      %s324 = smul.addr %s321, 16
      %s325 = sadd.s32 %s323, %s324
      %s326 = smul.addr %s325, 4
      %s327 = scalar_lea.vmem %s6, %s326
      %p328 = pneg %p177
      %p329 = pneg %p174
      %p330 = pneg %p203
      %p331 = pneg %p200
      %p332 = scmp.lt.s32.totalorder %s32, 17
      %s333 = scalar_select %p332, %s32, 17
      %s334 = smul.addr %s333, 8
      %s335 = scalar_lea.vmem %s7, %s334
      %p336 = scmp.lt.s32.totalorder %s32, 17
      %s337 = scalar_select %p336, %s32, 17
      %s338 = smul.addr %s337, 4
      %s339 = scalar_lea.vmem %s2, %s338
      %p340 = scmp.lt.s32.totalorder %s32, 17
      %s341 = scalar_select %p340, %s32, 17
      %s342 = smul.addr %s341, 8
      %s343 = scalar_lea.vmem %s3, %s342
      %s344 = sld [smem:[#allocation4 + %s32]]
      %p345 = scmp.lt.s32.totalorder %s344, 15
      %s346 = scalar_select %p345, %s344, 15
      %p347 = scmp.lt.s32.totalorder %s33, 0
      %s348 = scalar_select %p347, %s33, 0
      %s349 = smul.addr %s346, 4
      %s350 = sadd.s32 %s348, %s349
      %s351 = smul.addr %s350, 4
      %s352 = scalar_lea.vmem %s4, %s351
      %s353 = sld [smem:[#allocation4 + %s32]]
      %s354 = sld [smem:[#allocation4 + %s32]]
      %p355 = scmp.lt.s32.totalorder %s354, 15
      %s356 = scalar_select %p355, %s354, 15
      %p357 = scmp.lt.s32.totalorder %s33, 0
      %s358 = scalar_select %p357, %s33, 0
      %s359 = smul.addr %s356, 4
      %s360 = sadd.s32 %s358, %s359
      %s361 = smul.addr %s360, 4
      %s362 = scalar_lea.vmem %s5, %s361
      %s363 = sld [smem:[#allocation4 + %s32]]
      %s364 = sld [smem:[#allocation4 + %s32]]
      %s365 = smul.u32 16, %s33
      %p366 = scmp.lt.s32.totalorder %s364, 15
      %s367 = scalar_select %p366, %s364, 15
      %p368 = scmp.lt.s32.totalorder %s365, 15
      %s369 = scalar_select %p368, %s365, 15
      %s370 = smul.addr %s367, 16
      %s371 = sadd.s32 %s369, %s370
      %s372 = smul.addr %s371, 4
      %s373 = scalar_lea.vmem %s6, %s372
      %s374 = sld [smem:[#allocation4 + %s32]]
      %s375 = smul.u32 16, %s33
      %p376 = scmp.lt.s32.totalorder %s32, 17
      %s377 = scalar_select %p376, %s32, 17
      %s378 = smul.addr %s377, 8
      %s379 = scalar_lea.vmem %s7, %s378
      %p381 = scmp.eq.s32.totalorder %s33, 0
      // Predicated region
      $region41: #{tpu_custom_call.1} parent=39 // pred_check
        %p382 = pneg %p381
      $region42: #{tpu_custom_call.1} parent=39 // pred_check_branch
        %384 = sbr.rel (%p382) target = $region44
      $region43: #{tpu_custom_call.1} parent=39 // pred_region
        %vm385 = vcmask 261120
        %386 = vst.msk [vmem:[#allocation2] sm:$0xff] %vm385, 0.0
      $region44: #{tpu_custom_call.1} parent=39 // pred_fallthru
        _
      %s387 = sld [smem:[#allocation5 + %s32]]
      %p388 = scmp.ne.s32.totalorder %s387, 0
      // Predicated region
      $region45: #{tpu_custom_call.1} parent=39 // pred_check
        %p389 = pneg %p388
      $region46: #{tpu_custom_call.1} parent=39 // pred_check_branch
        %391 = sbr.rel (%p389) target = $region48
      $region47: #{tpu_custom_call.1} parent=39 // pred_region
        %v392 = vld [vmem:[%s339] sm:$0xf]
        %v393 = vld [vmem:[%s352] sm:$0xf]
        %v394 = vld [vmem:[%s352 + $0x4] sm:$0xf]
        %v395 = vld [vmem:[%s352 + $0x8] sm:$0xf]
        %v396 = vld [vmem:[%s352 + $0xc] sm:$0xf]
        %v401 = vunpack.c.l.b16 %v393
        %v402 = vunpack.c.l.b16 %v394
        %v403 = vunpack.c.l.b16 %v395
        %v404 = vunpack.c.l.b16 %v396
        %v405 = vpack.c.b16 %v402, %v401
        %v406 = vpack.c.b16 %v404, %v403
        %vm409 = vcmask 261120
        %v411 = vsel %vm409, %v392, 0
        %413 = vmatprep.subr.bf16.mxu0 0
        %414 = vmatpush1.bf16.msra.mxu0 0
        %415 = vmatprep.subr.bf16.mxu0 0
        %416 = vmatpush1.bf16.msra.mxu0 0
        %417 = vmatprep.subr.bf16.mxu0 0
        %418 = vmatpush1.bf16.msra.mxu0 0
        %419 = vmatprep.subr.bf16.mxu0 0
        %420 = vmatpush1.bf16.msra.mxu0 0
        %421 = vmatprep.subr.bf16.mxu0 0
        %422 = vmatpush1.bf16.msra.mxu0 0
        %423 = vmatprep.subr.bf16.mxu0 0
        %424 = vmatpush1.bf16.msra.mxu0 0
        %425 = vmatprep.subr.bf16.mxu0 0
        %426 = vmatpush1.bf16.msra.mxu0 %v406
        %427 = vmatprep.subr.bf16.mxu0 0
        %428 = vmatpush1.bf16.msra.mxu0 %v405
        %429 = vmatprep.subr.bf16.mxu0 0
        %430 = vmatpush2.bf16.msra.mxu0 0
        %431 = vmatprep.subr.bf16.mxu0 0
        %432 = vmatpush2.bf16.msra.mxu0 0
        %433 = vmatprep.subr.bf16.mxu0 0
        %434 = vmatpush2.bf16.msra.mxu0 0
        %435 = vmatprep.subr.bf16.mxu0 0
        %436 = vmatpush2.bf16.msra.mxu0 0
        %437 = vmatprep.subr.bf16.mxu0 0
        %438 = vmatpush2.bf16.msra.mxu0 0
        %439 = vmatprep.subr.bf16.mxu0 0
        %440 = vmatpush2.bf16.msra.mxu0 0
        %441 = vmatprep.subr.bf16.mxu0 0
        %442 = vmatpush2.bf16.msra.mxu0 0
        %443 = vmatprep.subr.bf16.mxu0 0
        %444 = vmatpush2.bf16.msra.mxu0 0
        %445 = vmatprep.mubr.bf16.mxu0 0
        %446 = vmatmul.mubr.bf16.gmra.mxu0 %v411
        %v447 = vpop.f32.mrf.mxu0
        %v448 = vadd.f32 0.0, %v447
        %v449 = vpop.f32.mrf.mxu0
        %v450 = vpop.f32.mrf.mxu0
        %v451 = vpop.f32.mrf.mxu0
        %452 = vdwg.mxu0
        %v453 = vld [vmem:[%s362] sm:$0xf]
        %v454 = vld [vmem:[%s362 + $0x4] sm:$0xf]
        %v455 = vld [vmem:[%s362 + $0x8] sm:$0xf]
        %v456 = vld [vmem:[%s362 + $0xc] sm:$0xf]
        %v461 = vunpack.c.l.b16 %v453
        %v462 = vunpack.c.l.b16 %v454
        %v463 = vunpack.c.l.b16 %v455
        %v464 = vunpack.c.l.b16 %v456
        %v465 = vpack.c.b16 %v462, %v461
        %v466 = vpack.c.b16 %v464, %v463
        %469 = vmatprep.subr.bf16.mxu0 0
        %470 = vmatpush1.bf16.msra.mxu0 0
        %471 = vmatprep.subr.bf16.mxu0 0
        %472 = vmatpush1.bf16.msra.mxu0 0
        %473 = vmatprep.subr.bf16.mxu0 0
        %474 = vmatpush1.bf16.msra.mxu0 0
        %475 = vmatprep.subr.bf16.mxu0 0
        %476 = vmatpush1.bf16.msra.mxu0 0
        %477 = vmatprep.subr.bf16.mxu0 0
        %478 = vmatpush1.bf16.msra.mxu0 0
        %479 = vmatprep.subr.bf16.mxu0 0
        %480 = vmatpush1.bf16.msra.mxu0 0
        %481 = vmatprep.subr.bf16.mxu0 0
        %482 = vmatpush1.bf16.msra.mxu0 %v466
        %483 = vmatprep.subr.bf16.mxu0 0
        %484 = vmatpush1.bf16.msra.mxu0 %v465
        %485 = vmatprep.subr.bf16.mxu0 0
        %486 = vmatpush2.bf16.msra.mxu0 0
        %487 = vmatprep.subr.bf16.mxu0 0
        %488 = vmatpush2.bf16.msra.mxu0 0
        %489 = vmatprep.subr.bf16.mxu0 0
        %490 = vmatpush2.bf16.msra.mxu0 0
        %491 = vmatprep.subr.bf16.mxu0 0
        %492 = vmatpush2.bf16.msra.mxu0 0
        %493 = vmatprep.subr.bf16.mxu0 0
        %494 = vmatpush2.bf16.msra.mxu0 0
        %495 = vmatprep.subr.bf16.mxu0 0
        %496 = vmatpush2.bf16.msra.mxu0 0
        %497 = vmatprep.subr.bf16.mxu0 0
        %498 = vmatpush2.bf16.msra.mxu0 0
        %499 = vmatprep.subr.bf16.mxu0 0
        %500 = vmatpush2.bf16.msra.mxu0 0
        %501 = vmatprep.mubr.bf16.mxu0 0
        %502 = vmatmul.mubr.bf16.gmra.mxu0 %v411
        %v503 = vpop.f32.mrf.mxu0
        %v504 = vadd.f32 0.0, %v503
        %v505 = vpop.f32.mrf.mxu0
        %v506 = vpop.f32.mrf.mxu0
        %v507 = vpop.f32.mrf.mxu0
        %508 = vdwg.mxu0
        %v509 = vxor.u32 %v448, 2147483648
        %v510 = vmul.f32 %v509, 1.442695
        %v511 = vpow.pop %v510
        %v512 = vadd.f32 %v511, 1.0
        %v513 = vrcp.pop %v512
        %v514 = vmul.f32 1.0, %v513
        %v515 = vmul.f32 %v448, %v514
        %v516 = vmul.f32 %v515, %v504
        %v517 = vpack.c.bf16 %v516, %v516
        %v518 = vld [vmem:[#allocation2] sm:$0xff]
        %v519 = vld [vmem:[%s373] sm:$0xf]
        %v520 = vld [vmem:[%s373 + $0x4] sm:$0xf]
        %v521 = vld [vmem:[%s373 + $0x8] sm:$0xf]
        %v522 = vld [vmem:[%s373 + $0xc] sm:$0xf]
        %v523 = vld [vmem:[%s373 + $0x10] sm:$0xf]
        %v524 = vld [vmem:[%s373 + $0x14] sm:$0xf]
        %v525 = vld [vmem:[%s373 + $0x18] sm:$0xf]
        %v526 = vld [vmem:[%s373 + $0x1c] sm:$0xf]
        %v527 = vld [vmem:[%s373 + $0x20] sm:$0xf]
        %v528 = vld [vmem:[%s373 + $0x24] sm:$0xf]
        %v529 = vld [vmem:[%s373 + $0x28] sm:$0xf]
        %v530 = vld [vmem:[%s373 + $0x2c] sm:$0xf]
        %v531 = vld [vmem:[%s373 + $0x30] sm:$0xf]
        %v532 = vld [vmem:[%s373 + $0x34] sm:$0xf]
        %v533 = vld [vmem:[%s373 + $0x38] sm:$0xf]
        %v534 = vld [vmem:[%s373 + $0x3c] sm:$0xf]
        %v551 = vunpack.c.l.b16 %v519
        %v552 = vunpack.c.l.b16 %v520
        %v553 = vunpack.c.l.b16 %v521
        %v554 = vunpack.c.l.b16 %v522
        %v555 = vunpack.c.l.b16 %v523
        %v556 = vunpack.c.l.b16 %v524
        %v557 = vunpack.c.l.b16 %v525
        %v558 = vunpack.c.l.b16 %v526
        %v559 = vunpack.c.l.b16 %v527
        %v560 = vunpack.c.l.b16 %v528
        %v561 = vunpack.c.l.b16 %v529
        %v562 = vunpack.c.l.b16 %v530
        %v563 = vunpack.c.l.b16 %v531
        %v564 = vunpack.c.l.b16 %v532
        %v565 = vunpack.c.l.b16 %v533
        %v566 = vunpack.c.l.b16 %v534
        %v567 = vpack.c.b16 %v552, %v551
        %v568 = vpack.c.b16 %v554, %v553
        %v569 = vpack.c.b16 %v556, %v555
        %v570 = vpack.c.b16 %v558, %v557
        %v571 = vpack.c.b16 %v560, %v559
        %v572 = vpack.c.b16 %v562, %v561
        %v573 = vpack.c.b16 %v564, %v563
        %v574 = vpack.c.b16 %v566, %v565
        %583 = vmatprep.subr.bf16.mxu0 0
        %584 = vmatpush1.bf16.msra.mxu0 %v574
        %585 = vmatprep.subr.bf16.mxu0 0
        %586 = vmatpush1.bf16.msra.mxu0 %v573
        %587 = vmatprep.subr.bf16.mxu0 0
        %588 = vmatpush1.bf16.msra.mxu0 %v572
        %589 = vmatprep.subr.bf16.mxu0 0
        %590 = vmatpush1.bf16.msra.mxu0 %v571
        %591 = vmatprep.subr.bf16.mxu0 0
        %592 = vmatpush1.bf16.msra.mxu0 %v570
        %593 = vmatprep.subr.bf16.mxu0 0
        %594 = vmatpush1.bf16.msra.mxu0 %v569
        %595 = vmatprep.subr.bf16.mxu0 0
        %596 = vmatpush1.bf16.msra.mxu0 %v568
        %597 = vmatprep.subr.bf16.mxu0 0
        %598 = vmatpush1.bf16.msra.mxu0 %v567
        %599 = vmatprep.subr.bf16.mxu0 0
        %600 = vmatpush2.bf16.msra.mxu0 0
        %601 = vmatprep.subr.bf16.mxu0 0
        %602 = vmatpush2.bf16.msra.mxu0 0
        %603 = vmatprep.subr.bf16.mxu0 0
        %604 = vmatpush2.bf16.msra.mxu0 0
        %605 = vmatprep.subr.bf16.mxu0 0
        %606 = vmatpush2.bf16.msra.mxu0 0
        %607 = vmatprep.subr.bf16.mxu0 0
        %608 = vmatpush2.bf16.msra.mxu0 0
        %609 = vmatprep.subr.bf16.mxu0 0
        %610 = vmatpush2.bf16.msra.mxu0 0
        %611 = vmatprep.subr.bf16.mxu0 0
        %612 = vmatpush2.bf16.msra.mxu0 0
        %613 = vmatprep.subr.bf16.mxu0 0
        %614 = vmatpush2.bf16.msra.mxu0 0
        %615 = vmatprep.mubr.bf16.mxu0 0
        %616 = vmatmul.mubr.bf16.gmra.mxu0 %v517
        %v617 = vpop.f32.mrf.mxu0
        %v618 = vadd.f32 0.0, %v617
        %v619 = vpop.f32.mrf.mxu0
        %v620 = vpop.f32.mrf.mxu0
        %v621 = vpop.f32.mrf.mxu0
        %622 = vdwg.mxu0
        %v623 = vadd.f32 %v518, %v618
        %624 = vst.msk [vmem:[#allocation2] sm:$0xff] %vm409, %v623
      $region48: #{tpu_custom_call.1} parent=39 // pred_fallthru
        _
      // Predicated region
      $region49: #{tpu_custom_call.1} parent=39 // pred_check
        %p625 = pneg %p381
      $region50: #{tpu_custom_call.1} parent=39 // pred_check_branch
        %627 = sbr.rel (%p625) target = $region52
      $region51: #{tpu_custom_call.1} parent=39 // pred_region
        %v628 = vld [vmem:[#allocation2] sm:$0xff]
        %v629 = vld [vmem:[%s343] sm:$0xff]
        %631 = vset.pattern.permute.xlu0 0
        %632 = vperm.xlu0 %631, %v629
        %v633 = vpop.permute.xlu0 %632
        %v635 = vmul.f32 %v628, %v633
        %vm636 = vcmask 261120
        %637 = vst.msk [vmem:[%s379] sm:$0xff] %vm636, %v635
      $region52: #{tpu_custom_call.1} parent=39 // pred_fallthru
        _
      %p638 = scmp.lt.s32.totalorder %s32, 17
      %s639 = scalar_select %p638, %s32, 17
      %s640 = smul.addr %s639, 8
      %s641 = scalar_lea.vmem %s7, %s640
      // Predicated region
      $region53: #{tpu_custom_call.1} parent=39 // pred_check
        %p642 = pneg %p200
      $region54: #{tpu_custom_call.1} parent=39 // pred_check_branch
        %644 = sbr.rel (%p642) target = $region56
      $region55: #{tpu_custom_call.1} parent=39 // pred_region
        _
      $region56: #{tpu_custom_call.1} parent=39 // pred_fallthru
        _
    $region40: #{tpu_custom_call.1} parent=5 // pred_fallthru
      _
    %p645 = scmp.le.s32.totalorder 2, %s23
    // Predicated region
    $region57: #{tpu_custom_call.1} parent=5 // pred_check
      %p646 = pneg %p645
    $region58: #{tpu_custom_call.1} parent=5 // pred_check_branch
      %648 = sbr.rel (%p646) target = $region60
    $region59: #{tpu_custom_call.1} parent=5 // pred_region
      %s649 = ssub.s32 %s23, 2
      // Predicated region
      $region61: #{tpu_custom_call.1} parent=59 // pred_check
        %p650 = pneg %p206
      $region62: #{tpu_custom_call.1} parent=59 // pred_check_branch
        %652 = sbr.rel (%p650) target = $region64
      $region63: #{tpu_custom_call.1} parent=59 // pred_region
        %p653 = scmp.lt.s32.totalorder %s34, 17
        %s654 = scalar_select %p653, %s34, 17
        %s655 = smul.addr %s654, 8
        %s656 = scalar_lea.vmem %s7, %s655
      $region64: #{tpu_custom_call.1} parent=59 // pred_fallthru
        _
    $region60: #{tpu_custom_call.1} parent=5 // pred_fallthru
      _
  $region6: #{tpu_custom_call.1} parent=0 // loop_footer
    %s27 = sadd.s32 1, %s23
  $region7: #{tpu_custom_call.1} parent=0 // loop_footer_branch
    %22 = sbr.rel target = $region3
  $region8: #{tpu_custom_call.1} parent=0 // loop_exit
    _

</llo_original>
